<compile_context>
chip_gen: v7x
topology: tpu7x:2x2x1
jax: 0.10.0
libtpu: 0.0.40
codegen_flags: <defaults>
</compile_context>

<pallas_src>
import jax
import jax.numpy as jnp
from jax import lax
from jax.experimental import pallas as pl
from jax.experimental.pallas import tpu as pltpu


_SQRT_HALF = 0.7071067811865476  # 1/sqrt(2)


def _gelu_exact(x):
    # PyTorch F.gelu default: exact erf formulation (evaluated in f32).
    return 0.5 * x * (1.0 + lax.erf(x * _SQRT_HALF))


def _round_up(x, m):
    return (x + m - 1) // m * m


def controller_kernel(tgt_ref, smr_ref, wfc_t_ref, wfc_s_ref, bfc_ref,
                      w_heads_ref, b_heads_ref, token_ref, pos_ref):
    e_pad = token_ref.shape[-1]          # 128-aligned token width

    # fc as a split-K matmul (target/summary halves of Wfc): bf16 operands,
    # f32 accumulation on the MXU.  No concatenated (B, 2E) activation needed.
    h = (jnp.dot(tgt_ref[...], wfc_t_ref[...], preferred_element_type=jnp.float32)
         + jnp.dot(smr_ref[...], wfc_s_ref[...], preferred_element_type=jnp.float32)
         + bfc_ref[...])
    h = _gelu_exact(h)

    # Fused token + position heads: one lane-dense bf16 MXU pass over
    # [H, E_pad + P_pad]; the split point e_pad is a multiple of 128.
    y = (jnp.dot(h.astype(jnp.bfloat16), w_heads_ref[...],
                 preferred_element_type=jnp.float32)
         + b_heads_ref[...])
    t = y[:, :e_pad]
    p = y[:, e_pad:]

    # L2 normalize (matches F.normalize p=2, eps=1e-12):
    #   t / max(||t||, eps) == t * rsqrt(max(||t||^2, eps^2));  rsqrt -> EUP slot.
    # Padded token columns are exactly zero, so they do not change the norm.
    sumsq = jnp.sum(t * t, axis=-1, keepdims=True)
    inv_norm = lax.rsqrt(jnp.maximum(sumsq, jnp.float32(1e-24)))
    token_ref[...] = (t * inv_norm).astype(token_ref.dtype)
    pos_ref[...] = p.astype(pos_ref.dtype)


def prepare_params(params, embed_dim):
    """Repack nn.Linear-style params for the kernel:
       - split Wfc along K into target / summary halves (kills the input concat),
       - zero-pad token head to round_up(E,128) and pos head to round_up(P,128)
         columns, then fuse weights+biases along the output axis (lane-dense,
         128-aligned split),
       - store matmul weights in bf16 (biases stay f32, added post-accumulation)."""
    wfc, bfc, wtok, btok, wpos, bpos = params
    E = embed_dim
    H = wfc.shape[1]
    P = wpos.shape[1]
    E_pad = _round_up(E, 128)
    P_pad = _round_up(P, 128)

    wfc_t = wfc[:E, :].astype(jnp.bfloat16)
    wfc_s = wfc[E:, :].astype(jnp.bfloat16)
    bfc = bfc.astype(jnp.float32)

    wtok_p = jnp.zeros((H, E_pad), jnp.float32).at[:, :E].set(wtok)
    wpos_p = jnp.zeros((H, P_pad), jnp.float32).at[:, :P].set(wpos)
    w_heads = jnp.concatenate([wtok_p, wpos_p], axis=-1).astype(jnp.bfloat16)

    btok_p = jnp.zeros((1, E_pad), jnp.float32).at[:, :E].set(btok)
    bpos_p = jnp.zeros((1, P_pad), jnp.float32).at[:, :P].set(bpos)
    b_heads = jnp.concatenate([btok_p, bpos_p], axis=-1)   # (1, E_pad + P_pad) f32

    return wfc_t, wfc_s, bfc, w_heads, b_heads, E, P, E_pad, P_pad


def two_stage_controller(target_vec, summary_vec, kparams, *, block_b=256):
    """target_vec, summary_vec: (B, E) f32.  kparams from prepare_params.
    Returns (token_vec (B, E), pos_logits (B, P))."""
    wfc_t, wfc_s, bfc, w_heads, b_heads, E, P, E_pad, P_pad = kparams
    B = target_vec.shape[0]
    H = wfc_t.shape[1]
    EP_pad = E_pad + P_pad

    # bf16 activations into the kernel (MXU-native; halves activation DMA).
    target_bf = target_vec.astype(jnp.bfloat16)
    summary_bf = summary_vec.astype(jnp.bfloat16)

    # Batch tile: multiple of 16 sublanes (bf16 packing); guarantee >= 2 grid
    # steps whenever B allows it (v7x megacore + DMA/compute pipelining).
    tb = min(block_b, _round_up(B, 16))
    if B > 16 and _round_up(B, tb) // tb < 2:
        tb = _round_up(pl.cdiv(B, 2), 16)
    padded_b = _round_up(B, tb)
    if padded_b != B:
        pad = ((0, padded_b - B), (0, 0))
        target_bf = jnp.pad(target_bf, pad)
        summary_bf = jnp.pad(summary_bf, pad)
    grid = (padded_b // tb,)

    def tile_spec(cols):
        return pl.BlockSpec((tb, cols), lambda i: (i, 0))

    def resident_spec(rows, cols):
        # Weights/biases: same block every grid step -> fetched once, stay in
        # VMEM; Buffered(1) avoids pointless double-buffering of constants.
        return pl.BlockSpec((rows, cols), lambda i: (0, 0),
                            pipeline_mode=pl.Buffered(1))

    # VMEM budget: single-buffered resident weights + double-buffered
    # activation/output tiles + in-flight intermediates, +30% headroom.
    resident_bytes = (2 * E * H * 2          # wfc halves (bf16)
                      + H * 4                # bfc (f32)
                      + H * EP_pad * 2       # fused head weight (bf16)
                      + EP_pad * 4)          # fused head bias (f32)
    pipeline_bytes = 2 * (2 * tb * E * 2     # target + summary tiles (bf16)
                          + tb * E_pad * 4   # token out tile (f32)
                          + tb * P_pad * 4)  # pos out tile (f32)
    work_bytes = tb * H * (4 + 2) + tb * EP_pad * 4   # h (f32 + bf16 copy), y
    vmem_limit = int((resident_bytes + pipeline_bytes + work_bytes) * 1.3)
    vmem_limit = min(max(vmem_limit, 16 * 1024 * 1024), 64 * 1024 * 1024)

    flops = 2 * padded_b * (2 * E * H + H * EP_pad)
    bytes_accessed = (2 * padded_b * E * 2           # bf16 activations in
                      + resident_bytes               # weights + biases
                      + padded_b * EP_pad * 4)       # outputs
    cost = pl.CostEstimate(flops=flops,
                           transcendentals=padded_b * (H + 1),   # erf + rsqrt
                           bytes_accessed=bytes_accessed)

    token, pos = pl.pallas_call(
        controller_kernel,
        out_shape=(
            jax.ShapeDtypeStruct((padded_b, E_pad), jnp.float32),
            jax.ShapeDtypeStruct((padded_b, P_pad), jnp.float32),
        ),
        grid=grid,
        in_specs=[
            tile_spec(E),                  # target tile (bf16)
            tile_spec(E),                  # summary tile (bf16)
            resident_spec(E, H),           # Wfc[:E, :]   (bf16)
            resident_spec(E, H),           # Wfc[E:, :]   (bf16)
            resident_spec(1, H),           # bfc          (f32)
            resident_spec(H, EP_pad),      # fused head weight (bf16)
            resident_spec(1, EP_pad),      # fused head bias   (f32)
        ],
        out_specs=(
            pl.BlockSpec((tb, E_pad), lambda i: (i, 0)),
            pl.BlockSpec((tb, P_pad), lambda i: (i, 0)),
        ),
        compiler_params=pltpu.CompilerParams(
            dimension_semantics=("parallel",),
            vmem_limit_bytes=vmem_limit),
        cost_estimate=cost,
    )(target_bf, summary_bf, wfc_t, wfc_s, bfc, w_heads, b_heads)

    return token[:B, :E], pos[:B, :P]


def init_params(key, embed_dim, hidden_dim, max_buffer_len):
    """Deterministic synthetic init (shapes match the nn.Linear layers; weights
    stored pre-transposed as [in, out])."""
    k1, k2, k3, k4, k5, k6 = jax.random.split(key, 6)
    P = max_buffer_len + 1
    wfc = jax.random.normal(k1, (2 * embed_dim, hidden_dim), jnp.float32) * 0.02
    bfc = jax.random.normal(k2, (1, hidden_dim), jnp.float32) * 0.01
    wtok = jax.random.normal(k3, (hidden_dim, embed_dim), jnp.float32) * 0.02
    btok = jax.random.normal(k4, (1, embed_dim), jnp.float32) * 0.01
    wpos = jax.random.normal(k5, (hidden_dim, P), jnp.float32) * 0.02
    bpos = jax.random.normal(k6, (1, P), jnp.float32) * 0.01
    return wfc, bfc, wtok, btok, wpos, bpos


def reference(target_vec, summary_vec, params):
    """Pure-JAX f32 reference (mirrors the PyTorch module) for a sanity check."""
    wfc, bfc, wtok, btok, wpos, bpos = params
    x = jnp.concatenate([target_vec, summary_vec], axis=-1)
    h = _gelu_exact(x @ wfc + bfc)
    t = h @ wtok + btok
    t = t / jnp.maximum(jnp.linalg.norm(t, axis=-1, keepdims=True), 1e-12)
    p = h @ wpos + bpos
    return t, p


if __name__ == "__main__":
    # Small shapes consistent with the module's forward.
    batch = 2
    embed_dim = 32
    hidden_dim = 64
    max_buffer_len = 8

    key = jax.random.PRNGKey(0)
    k_t, k_s, k_p = jax.random.split(key, 3)
    target_vec = jax.random.normal(k_t, (batch, embed_dim), jnp.float32)
    summary_vec = jax.random.normal(k_s, (batch, embed_dim), jnp.float32)
    params = init_params(k_p, embed_dim, hidden_dim, max_buffer_len)
    kparams = prepare_params(params, embed_dim)

    token_vec, pos_logits = two_stage_controller(target_vec, summary_vec, kparams)
    jax.block_until_ready((token_vec, pos_logits))

    ref_tok, ref_pos = reference(target_vec, summary_vec, params)
    assert token_vec.shape == (batch, embed_dim)
    assert pos_logits.shape == (batch, max_buffer_len + 1)
    # Tolerances loosened vs. the f32 kernel: matmul operands are bf16
    # (f32 accumulation), per the perf review.
    assert jnp.allclose(token_vec, ref_tok, atol=2e-2, rtol=2e-2)
    assert jnp.allclose(pos_logits, ref_pos, atol=2e-2, rtol=2e-2)

    print("KERNEL_OK")
</pallas_src>

<mosaic_0001>
module attributes {stable_mosaic.version = 11 : i64} {
  func.func @controller_kernel(%arg0: i32, %arg1: memref<16x32xbf16, #tpu.memory_space<vmem>>, %arg2: memref<16x32xbf16, #tpu.memory_space<vmem>>, %arg3: memref<32x64xbf16, #tpu.memory_space<vmem>>, %arg4: memref<32x64xbf16, #tpu.memory_space<vmem>>, %arg5: memref<1x64xf32, #tpu.memory_space<vmem>>, %arg6: memref<64x256xbf16, #tpu.memory_space<vmem>>, %arg7: memref<1x256xf32, #tpu.memory_space<vmem>>, %arg8: memref<16x128xf32, #tpu.memory_space<vmem>>, %arg9: memref<16x128xf32, #tpu.memory_space<vmem>>) attributes {dimension_semantics = [#tpu.dimension_semantics<parallel>], iteration_bounds = array<i64: 1>, scalar_prefetch = 0 : i64, scratch_operands = 0 : i64, tpu.core_type = #tpu.core_type<tc>, window_params = [{transform_indices = @transform_0, window_bounds = array<i64: 16, 32>}, {transform_indices = @transform_1, window_bounds = array<i64: 16, 32>}, {pipeline_mode = #tpu.pipeline_mode<synchronous>, transform_indices = @transform_2, window_bounds = array<i64: 32, 64>}, {pipeline_mode = #tpu.pipeline_mode<synchronous>, transform_indices = @transform_3, window_bounds = array<i64: 32, 64>}, {pipeline_mode = #tpu.pipeline_mode<synchronous>, transform_indices = @transform_4, window_bounds = array<i64: 1, 64>}, {pipeline_mode = #tpu.pipeline_mode<synchronous>, transform_indices = @transform_5, window_bounds = array<i64: 64, 256>}, {pipeline_mode = #tpu.pipeline_mode<synchronous>, transform_indices = @transform_6, window_bounds = array<i64: 1, 256>}, {transform_indices = @transform_7, window_bounds = array<i64: 16, 128>}, {transform_indices = @transform_8, window_bounds = array<i64: 16, 128>}]} {
    %c0 = arith.constant 0 : index
    %c0_0 = arith.constant 0 : index
    %0 = vector.load %arg1[%c0, %c0_0] : memref<16x32xbf16, #tpu.memory_space<vmem>>, vector<16x32xbf16>
    %c0_1 = arith.constant 0 : index
    %c0_2 = arith.constant 0 : index
    %1 = vector.load %arg3[%c0_1, %c0_2] : memref<32x64xbf16, #tpu.memory_space<vmem>>, vector<32x64xbf16>
    %cst = arith.constant dense<0.000000e+00> : vector<16x64xf32>
    %2 = tpu.matmul %0, %1, %cst {dimension_numbers = #tpu.dot_dimension_numbers<[1], [0], [0], [1], [0, 0, 1, 1], [], []>} : vector<16x32xbf16>, vector<32x64xbf16>, vector<16x64xf32> -> vector<16x64xf32>
    %c0_3 = arith.constant 0 : index
    %c0_4 = arith.constant 0 : index
    %3 = vector.load %arg2[%c0_3, %c0_4] : memref<16x32xbf16, #tpu.memory_space<vmem>>, vector<16x32xbf16>
    %c0_5 = arith.constant 0 : index
    %c0_6 = arith.constant 0 : index
    %4 = vector.load %arg4[%c0_5, %c0_6] : memref<32x64xbf16, #tpu.memory_space<vmem>>, vector<32x64xbf16>
    %cst_7 = arith.constant dense<0.000000e+00> : vector<16x64xf32>
    %5 = tpu.matmul %3, %4, %cst_7 {dimension_numbers = #tpu.dot_dimension_numbers<[1], [0], [0], [1], [0, 0, 1, 1], [], []>} : vector<16x32xbf16>, vector<32x64xbf16>, vector<16x64xf32> -> vector<16x64xf32>
    %6 = arith.addf %2, %5 : vector<16x64xf32>
    %c0_8 = arith.constant 0 : index
    %c0_9 = arith.constant 0 : index
    %7 = vector.load %arg5[%c0_8, %c0_9] : memref<1x64xf32, #tpu.memory_space<vmem>>, vector<1x64xf32>
    %8 = vector.broadcast %7 : vector<1x64xf32> to vector<16x64xf32>
    %9 = arith.addf %6, %8 : vector<16x64xf32>
    %cst_10 = arith.constant 5.000000e-01 : f32
    %10 = vector.broadcast %cst_10 : f32 to vector<16x64xf32>
    %11 = arith.mulf %10, %9 : vector<16x64xf32>
    %cst_11 = arith.constant 0.707106769 : f32
    %12 = vector.broadcast %cst_11 : f32 to vector<16x64xf32>
    %13 = arith.mulf %9, %12 : vector<16x64xf32>
    %14 = math.erf %13 : vector<16x64xf32>
    %cst_12 = arith.constant 1.000000e+00 : f32
    %15 = vector.broadcast %cst_12 : f32 to vector<16x64xf32>
    %16 = arith.addf %15, %14 : vector<16x64xf32>
    %17 = arith.mulf %11, %16 : vector<16x64xf32>
    %18 = arith.truncf %17 : vector<16x64xf32> to vector<16x64xbf16>
    %c0_13 = arith.constant 0 : index
    %c0_14 = arith.constant 0 : index
    %19 = vector.load %arg6[%c0_13, %c0_14] : memref<64x256xbf16, #tpu.memory_space<vmem>>, vector<64x256xbf16>
    %cst_15 = arith.constant dense<0.000000e+00> : vector<16x256xf32>
    %20 = tpu.matmul %18, %19, %cst_15 {dimension_numbers = #tpu.dot_dimension_numbers<[1], [0], [0], [1], [0, 0, 1, 1], [], []>} : vector<16x64xbf16>, vector<64x256xbf16>, vector<16x256xf32> -> vector<16x256xf32>
    %c0_16 = arith.constant 0 : index
    %c0_17 = arith.constant 0 : index
    %21 = vector.load %arg7[%c0_16, %c0_17] : memref<1x256xf32, #tpu.memory_space<vmem>>, vector<1x256xf32>
    %22 = vector.broadcast %21 : vector<1x256xf32> to vector<16x256xf32>
    %23 = arith.addf %20, %22 : vector<16x256xf32>
    %24 = vector.extract_strided_slice %23 {offsets = [0, 0], sizes = [16, 128], strides = [1, 1]} : vector<16x256xf32> to vector<16x128xf32>
    %25 = vector.extract_strided_slice %23 {offsets = [0, 128], sizes = [16, 128], strides = [1, 1]} : vector<16x256xf32> to vector<16x128xf32>
    %26 = arith.mulf %24, %24 : vector<16x128xf32>
    %cst_18 = arith.constant dense<0.000000e+00> : vector<16xf32>
    %27 = vector.multi_reduction <add>, %26, %cst_18 [1] : vector<16x128xf32> to vector<16xf32>
    %28 = vector.shape_cast %27 : vector<16xf32> to vector<16x1xf32>
    %cst_19 = arith.constant 1.000000e-24 : f32
    %29 = vector.broadcast %cst_19 : f32 to vector<16x1xf32>
    %30 = arith.maximumf %28, %29 : vector<16x1xf32>
    %31 = math.rsqrt %30 : vector<16x1xf32>
    %32 = vector.broadcast %31 : vector<16x1xf32> to vector<16x128xf32>
    %33 = arith.mulf %24, %32 : vector<16x128xf32>
    %c0_20 = arith.constant 0 : index
    %c0_21 = arith.constant 0 : index
    %34 = vector.load %arg8[%c0_20, %c0_21] : memref<16x128xf32, #tpu.memory_space<vmem>>, vector<16x128xf32>
    tpu.vector_store %arg8[%c0_20, %c0_21], %33 {strides = array<i32>} : memref<16x128xf32, #tpu.memory_space<vmem>>, vector<16x128xf32>,
    %c0_22 = arith.constant 0 : index
    %c0_23 = arith.constant 0 : index
    %35 = vector.load %arg9[%c0_22, %c0_23] : memref<16x128xf32, #tpu.memory_space<vmem>>, vector<16x128xf32>
    tpu.vector_store %arg9[%c0_22, %c0_23], %25 {strides = array<i32>} : memref<16x128xf32, #tpu.memory_space<vmem>>, vector<16x128xf32>,
    return
  }
  func.func @transform_0(%arg0: i32) -> (i32, i32) {
    %c0_i32 = arith.constant 0 : i32
    %c0_i32_0 = arith.constant 0 : i32
    return %arg0, %c0_i32 : i32, i32
  }
  func.func @transform_1(%arg0: i32) -> (i32, i32) {
    %c0_i32 = arith.constant 0 : i32
    %c0_i32_0 = arith.constant 0 : i32
    return %arg0, %c0_i32 : i32, i32
  }
  func.func @transform_2(%arg0: i32) -> (i32, i32) {
    %c0_i32 = arith.constant 0 : i32
    %c0_i32_0 = arith.constant 0 : i32
    %c0_i32_1 = arith.constant 0 : i32
    return %c0_i32, %c0_i32_0 : i32, i32
  }
  func.func @transform_3(%arg0: i32) -> (i32, i32) {
    %c0_i32 = arith.constant 0 : i32
    %c0_i32_0 = arith.constant 0 : i32
    %c0_i32_1 = arith.constant 0 : i32
    return %c0_i32, %c0_i32_0 : i32, i32
  }
  func.func @transform_4(%arg0: i32) -> (i32, i32) {
    %c0_i32 = arith.constant 0 : i32
    %c0_i32_0 = arith.constant 0 : i32
    %c0_i32_1 = arith.constant 0 : i32
    return %c0_i32, %c0_i32_0 : i32, i32
  }
  func.func @transform_5(%arg0: i32) -> (i32, i32) {
    %c0_i32 = arith.constant 0 : i32
    %c0_i32_0 = arith.constant 0 : i32
    %c0_i32_1 = arith.constant 0 : i32
    return %c0_i32, %c0_i32_0 : i32, i32
  }
  func.func @transform_6(%arg0: i32) -> (i32, i32) {
    %c0_i32 = arith.constant 0 : i32
    %c0_i32_0 = arith.constant 0 : i32
    %c0_i32_1 = arith.constant 0 : i32
    return %c0_i32, %c0_i32_0 : i32, i32
  }
  func.func @transform_7(%arg0: i32) -> (i32, i32) {
    %c0_i32 = arith.constant 0 : i32
    %c0_i32_0 = arith.constant 0 : i32
    return %arg0, %c0_i32 : i32, i32
  }
  func.func @transform_8(%arg0: i32) -> (i32, i32) {
    %c0_i32 = arith.constant 0 : i32
    %c0_i32_0 = arith.constant 0 : i32
    return %arg0, %c0_i32 : i32, i32
  }
}

</mosaic_0001>

<llo_original>
// kernel: tpu_custom_call.1
$region0: #{tpu_custom_call.1}
  #allocation0 [shape = 'u32[]', space=smem, size = 0x4, offset = 0x4, fixed_abs, tag = 'smem constant byte address 0x4 - core index']
  #allocation1 [shape = 'u32[144,128]{1,0:T(1,128)}', space=vmem, size = 0x12000, scoped, tag = 'internal scratch']
  %s0 = inlined_call_operand.hbm [shape: bf16[16,32], index: 0, kind: input, shape index: {}]
  %s1 = inlined_call_operand.hbm [shape: bf16[16,32], index: 1, kind: input, shape index: {}]
  %s2 = inlined_call_operand.hbm [shape: bf16[32,64], index: 2, kind: input, shape index: {}]
  %s3 = inlined_call_operand.hbm [shape: bf16[32,64], index: 3, kind: input, shape index: {}]
  %s4 = inlined_call_operand.vmem [shape: f32[1,64], index: 4, kind: input, shape index: {}]
  %s5 = inlined_call_operand.hbm [shape: bf16[64,256], index: 5, kind: input, shape index: {}]
  %s6 = inlined_call_operand.vmem [shape: f32[1,256], index: 6, kind: input, shape index: {}]
  %s7 = inlined_call_operand.hbm [shape: f32[16,128], index: 7, kind: output, shape index: {0}]
  %s8 = inlined_call_operand.hbm [shape: f32[16,128], index: 8, kind: output, shape index: {1}]
  %9 = xla_tuple %s7, %s8
  %s10 = sld [smem:[#allocation0]]
  $region66: #{tpu_custom_call.1} parent=0
    _
  %s12 = ssub.s32 1, %s10
  %s13 = scalar_select 0, %s12, %s10
  $region1: #{tpu_custom_call.1} parent=0
    #allocation2 [shape = 'u8[4096]{0}', space=vmem, size = 0x1000, scoped, tag = 'input window, operand 0, single buffered']
    #allocation3 [shape = 's32[1]{0}', space=sflag, size = 0x4, scoped, tag = 'scoped memory for tpu_custom_call.1']
    #allocation4 [shape = 's32[1]{0}', space=sflag, size = 0x4, scoped, tag = 'scoped memory for tpu_custom_call.1']
    #allocation5 [shape = 'u8[4096]{0}', space=vmem, size = 0x1000, scoped, tag = 'input window, operand 1, single buffered']
    #allocation6 [shape = 's32[1]{0}', space=sflag, size = 0x4, scoped, tag = 'scoped memory for tpu_custom_call.1']
    #allocation7 [shape = 'u8[8192]{0}', space=vmem, size = 0x2000, scoped, tag = 'input window, operand 2, single buffered']
    #allocation8 [shape = 'u8[8192]{0}', space=vmem, size = 0x2000, scoped, tag = 'input window, operand 3, single buffered']
    #allocation9 [shape = 's32[1]{0}', space=sflag, size = 0x4, scoped, tag = 'scoped memory for tpu_custom_call.1']
    #allocation10 [shape = 'u8[32768]{0}', space=vmem, size = 0x8000, scoped, tag = 'input window, operand 5, single buffered']
    #allocation11 [shape = 'u8[8192]{0}', space=vmem, size = 0x2000, scoped, tag = 'output window, operand 0, single buffered']
    #allocation12 [shape = 'u8[8192]{0}', space=vmem, size = 0x2000, scoped, tag = 'output window, operand 1, single buffered']
    #allocation13 [shape = 's32[1]{0}', space=sflag, size = 0x4, scoped, tag = 'scoped memory for tpu_custom_call.1']
    %14 = vsyncpa [#allocation3], 0
    %15 = vsyncpa [#allocation6], 0
    %16 = vsyncpa [#allocation9], 0
    %17 = vsyncpa [#allocation4], 0
    %18 = vsyncpa [#allocation13], 0
    // Predicated region
    $region2: #{tpu_custom_call.1} parent=1 // pred_check
      _
    $region3: #{tpu_custom_call.1} parent=1 // pred_check_branch
      %20 = sbr.rel (0) target = $region5
    $region4: #{tpu_custom_call.1} parent=1 // pred_region
      %s22 = ssub.s32 128, 128
      %23 = vsyncadd [#allocation3], %s22
      %s24 = sshll.u32 [#allocation2], 4
      %s25 = int_to_ptr.vmem [resolvable:$true] %s24
      %30 = dma.hbm_to_vmem [thread:$0]  %s0, 128, %s25, [#allocation3], 64, 64, 4
    $region5: #{tpu_custom_call.1} parent=1 // pred_fallthru
      _
    // Predicated region
    $region6: #{tpu_custom_call.1} parent=1 // pred_check
      _
    $region7: #{tpu_custom_call.1} parent=1 // pred_check_branch
      %32 = sbr.rel (0) target = $region9
    $region8: #{tpu_custom_call.1} parent=1 // pred_region
      %s34 = ssub.s32 128, 128
      %35 = vsyncadd [#allocation6], %s34
      %s36 = sshll.u32 [#allocation5], 4
      %s37 = int_to_ptr.vmem [resolvable:$true] %s36
      %42 = dma.hbm_to_vmem [thread:$0]  %s1, 128, %s37, [#allocation6], 64, 64, 4
    $region9: #{tpu_custom_call.1} parent=1 // pred_fallthru
      _
    // Predicated region
    $region10: #{tpu_custom_call.1} parent=1 // pred_check
      _
    $region11: #{tpu_custom_call.1} parent=1 // pred_check_branch
      %44 = sbr.rel (0) target = $region13
    $region12: #{tpu_custom_call.1} parent=1 // pred_region
      %s46 = ssub.s32 256, 256
      %47 = vsyncadd [#allocation6], %s46
      %s48 = sshll.u32 [#allocation7], 4
      %s49 = int_to_ptr.vmem [resolvable:$true] %s48
      %54 = dma.hbm_to_vmem [thread:$0]  %s2, 256, %s49, [#allocation6], 64, 64, 4
    $region13: #{tpu_custom_call.1} parent=1 // pred_fallthru
      _
    // Predicated region
    $region14: #{tpu_custom_call.1} parent=1 // pred_check
      _
    $region15: #{tpu_custom_call.1} parent=1 // pred_check_branch
      %56 = sbr.rel (0) target = $region17
    $region16: #{tpu_custom_call.1} parent=1 // pred_region
      %s58 = ssub.s32 256, 256
      %59 = vsyncadd [#allocation9], %s58
      %s60 = sshll.u32 [#allocation8], 4
      %s61 = int_to_ptr.vmem [resolvable:$true] %s60
      %66 = dma.hbm_to_vmem [thread:$0]  %s3, 256, %s61, [#allocation9], 64, 64, 4
    $region17: #{tpu_custom_call.1} parent=1 // pred_fallthru
      _
    // Predicated region
    $region18: #{tpu_custom_call.1} parent=1 // pred_check
      _
    $region19: #{tpu_custom_call.1} parent=1 // pred_check_branch
      %68 = sbr.rel (0) target = $region21
    $region20: #{tpu_custom_call.1} parent=1 // pred_region
      _
    $region21: #{tpu_custom_call.1} parent=1 // pred_fallthru
      _
    // Predicated region
    $region22: #{tpu_custom_call.1} parent=1 // pred_check
      _
    $region23: #{tpu_custom_call.1} parent=1 // pred_check_branch
      %70 = sbr.rel (0) target = $region25
    $region24: #{tpu_custom_call.1} parent=1 // pred_region
      %s72 = ssub.s32 1024, 1024
      %73 = vsyncadd [#allocation9], %s72
      %s74 = sshll.u32 [#allocation10], 4
      %s75 = int_to_ptr.vmem [resolvable:$true] %s74
      %80 = dma.hbm_to_vmem [thread:$0]  %s5, 1024, %s75, [#allocation9], 128, 128, 8
    $region25: #{tpu_custom_call.1} parent=1 // pred_fallthru
      _
    // Predicated region
    $region26: #{tpu_custom_call.1} parent=1 // pred_check
      _
    $region27: #{tpu_custom_call.1} parent=1 // pred_check_branch
      %82 = sbr.rel (0) target = $region29
    $region28: #{tpu_custom_call.1} parent=1 // pred_region
      _
    $region29: #{tpu_custom_call.1} parent=1 // pred_fallthru
      _
    // Predicated region
    $region30: #{tpu_custom_call.1} parent=1 // pred_check
      _
    $region31: #{tpu_custom_call.1} parent=1 // pred_check_branch
      %84 = sbr.rel (0) target = $region33
    $region32: #{tpu_custom_call.1} parent=1 // pred_region
      %85 = dma.done [#allocation3], 128
    $region33: #{tpu_custom_call.1} parent=1 // pred_fallthru
      _
    // Predicated region
    $region34: #{tpu_custom_call.1} parent=1 // pred_check
      _
    $region35: #{tpu_custom_call.1} parent=1 // pred_check_branch
      %87 = sbr.rel (0) target = $region37
    $region36: #{tpu_custom_call.1} parent=1 // pred_region
      %88 = dma.done [#allocation6], 128
    $region37: #{tpu_custom_call.1} parent=1 // pred_fallthru
      _
    // Predicated region
    $region38: #{tpu_custom_call.1} parent=1 // pred_check
      _
    $region39: #{tpu_custom_call.1} parent=1 // pred_check_branch
      %90 = sbr.rel (0) target = $region41
    $region40: #{tpu_custom_call.1} parent=1 // pred_region
      %91 = dma.done [#allocation6], 256
    $region41: #{tpu_custom_call.1} parent=1 // pred_fallthru
      _
    // Predicated region
    $region42: #{tpu_custom_call.1} parent=1 // pred_check
      _
    $region43: #{tpu_custom_call.1} parent=1 // pred_check_branch
      %93 = sbr.rel (0) target = $region45
    $region44: #{tpu_custom_call.1} parent=1 // pred_region
      %94 = dma.done [#allocation9], 256
    $region45: #{tpu_custom_call.1} parent=1 // pred_fallthru
      _
    // Predicated region
    $region46: #{tpu_custom_call.1} parent=1 // pred_check
      _
    $region47: #{tpu_custom_call.1} parent=1 // pred_check_branch
      %96 = sbr.rel (0) target = $region49
    $region48: #{tpu_custom_call.1} parent=1 // pred_region
      %97 = dma.done [#allocation9], 1024
    $region49: #{tpu_custom_call.1} parent=1 // pred_fallthru
      _
    %v99 = vld [vmem:[#allocation2] sm:$0xf]
    %v100 = vld [vmem:[#allocation2 + $0x4] sm:$0xf]
    %v101 = vld [vmem:[#allocation7] sm:$0xf]
    %v102 = vld [vmem:[#allocation7 + $0x4] sm:$0xf]
    %v103 = vld [vmem:[#allocation7 + $0x8] sm:$0xf]
    %v104 = vld [vmem:[#allocation7 + $0xc] sm:$0xf]
    %v105 = vld [vmem:[#allocation5] sm:$0xf]
    %v106 = vld [vmem:[#allocation5 + $0x4] sm:$0xf]
    %v107 = vld [vmem:[#allocation8] sm:$0xf]
    %v108 = vld [vmem:[#allocation8 + $0x4] sm:$0xf]
    %v109 = vld [vmem:[#allocation8 + $0x8] sm:$0xf]
    %v110 = vld [vmem:[#allocation8 + $0xc] sm:$0xf]
    %v113 = vunpack.c.l.b16 %v105
    %v114 = vunpack.c.l.b16 %v106
    %v115 = vpack.c.b16 %v114, %v113
    %v120 = vunpack.c.l.b16 %v107
    %v121 = vunpack.c.l.b16 %v108
    %v122 = vunpack.c.l.b16 %v109
    %v123 = vunpack.c.l.b16 %v110
    %v124 = vpack.c.b16 %v121, %v120
    %v125 = vpack.c.b16 %v123, %v122
    %vm128 = vcmask 261120
    %v130 = vsel %vm128, %v115, 0
    %132 = vmatprep.subr.bf16.mxu0 0
    %133 = vmatpush1.bf16.msra.mxu0 %v124
    %134 = vmatprep.subr.bf16.mxu0 0
    %135 = vmatpush1.bf16.msra.mxu0 %v125
    %136 = vmatprep.subr.bf16.mxu0 0
    %137 = vmatpush1.bf16.msra.mxu0 0
    %138 = vmatprep.subr.bf16.mxu0 0
    %139 = vmatpush1.bf16.msra.mxu0 0
    %140 = vmatprep.subr.bf16.mxu0 0
    %141 = vmatpush1.bf16.msra.mxu0 0
    %142 = vmatprep.subr.bf16.mxu0 0
    %143 = vmatpush1.bf16.msra.mxu0 0
    %144 = vmatprep.subr.bf16.mxu0 0
    %145 = vmatpush1.bf16.msra.mxu0 0
    %146 = vmatprep.subr.bf16.mxu0 0
    %147 = vmatpush1.bf16.msra.mxu0 0
    %148 = vmatprep.subr.bf16.mxu0 0
    %149 = vmatpush1.bf16.msra.mxu0 0
    %150 = vmatprep.subr.bf16.mxu0 0
    %151 = vmatpush1.bf16.msra.mxu0 0
    %152 = vmatprep.subr.bf16.mxu0 0
    %153 = vmatpush1.bf16.msra.mxu0 0
    %154 = vmatprep.subr.bf16.mxu0 0
    %155 = vmatpush1.bf16.msra.mxu0 0
    %156 = vmatprep.subr.bf16.mxu0 0
    %157 = vmatpush1.bf16.msra.mxu0 0
    %158 = vmatprep.subr.bf16.mxu0 0
    %159 = vmatpush1.bf16.msra.mxu0 0
    %160 = vmatprep.subr.bf16.mxu0 0
    %161 = vmatpush1.bf16.msra.mxu0 0
    %162 = vmatprep.subr.bf16.mxu0 0
    %163 = vmatpush1.bf16.msra.mxu0 0
    %164 = vmatprep.mubr.bf16.mxu0 0
    %165 = vmatmul.mubr.bf16.gmra.mrb[0].mxu0 %v130
    %v166 = vpop.f32.mrb[0].mxu0
    %v167 = vadd.f32 0.0, %v166
    %v168 = vpop.f32.mrb[0].mxu0
    %v169 = vpop.f32.mrb[0].mxu0
    %v170 = vadd.f32 0.0, %v169
    %v171 = vpop.f32.mrb[0].mxu0
    %172 = vdwg.mxu0
    %v175 = vunpack.c.l.b16 %v99
    %v176 = vunpack.c.l.b16 %v100
    %v177 = vpack.c.b16 %v176, %v175
    %v182 = vunpack.c.l.b16 %v101
    %v183 = vunpack.c.l.b16 %v102
    %v184 = vunpack.c.l.b16 %v103
    %v185 = vunpack.c.l.b16 %v104
    %v186 = vpack.c.b16 %v183, %v182
    %v187 = vpack.c.b16 %v185, %v184
    %v191 = vsel %vm128, %v177, 0
    %193 = vmatprep.subr.bf16.mxu0 0
    %194 = vmatpush1.bf16.msra.mxu0 %v186
    %195 = vmatprep.subr.bf16.mxu0 0
    %196 = vmatpush1.bf16.msra.mxu0 %v187
    %197 = vmatprep.subr.bf16.mxu0 0
    %198 = vmatpush1.bf16.msra.mxu0 0
    %199 = vmatprep.subr.bf16.mxu0 0
    %200 = vmatpush1.bf16.msra.mxu0 0
    %201 = vmatprep.subr.bf16.mxu0 0
    %202 = vmatpush1.bf16.msra.mxu0 0
    %203 = vmatprep.subr.bf16.mxu0 0
    %204 = vmatpush1.bf16.msra.mxu0 0
    %205 = vmatprep.subr.bf16.mxu0 0
    %206 = vmatpush1.bf16.msra.mxu0 0
    %207 = vmatprep.subr.bf16.mxu0 0
    %208 = vmatpush1.bf16.msra.mxu0 0
    %209 = vmatprep.subr.bf16.mxu0 0
    %210 = vmatpush1.bf16.msra.mxu0 0
    %211 = vmatprep.subr.bf16.mxu0 0
    %212 = vmatpush1.bf16.msra.mxu0 0
    %213 = vmatprep.subr.bf16.mxu0 0
    %214 = vmatpush1.bf16.msra.mxu0 0
    %215 = vmatprep.subr.bf16.mxu0 0
    %216 = vmatpush1.bf16.msra.mxu0 0
    %217 = vmatprep.subr.bf16.mxu0 0
    %218 = vmatpush1.bf16.msra.mxu0 0
    %219 = vmatprep.subr.bf16.mxu0 0
    %220 = vmatpush1.bf16.msra.mxu0 0
    %221 = vmatprep.subr.bf16.mxu0 0
    %222 = vmatpush1.bf16.msra.mxu0 0
    %223 = vmatprep.subr.bf16.mxu0 0
    %224 = vmatpush1.bf16.msra.mxu0 0
    %225 = vmatprep.mubr.bf16.mxu0 0
    %226 = vmatmul.mubr.bf16.gmra.mrb[0].mxu0 %v191
    %v227 = vpop.f32.mrb[0].mxu0
    %v228 = vadd.f32 %v167, %v227
    %v229 = vpop.f32.mrb[0].mxu0
    %v230 = vpop.f32.mrb[0].mxu0
    %v231 = vadd.f32 %v170, %v230
    %v232 = vpop.f32.mrb[0].mxu0
    %233 = vdwg.mxu0
    %v234 = vld [vmem:[%s4] sm:$0x1]
    %v236 = vlaneseq
    %v237 = vshrl.u32 %v236, 7
    %v238 = vsub.s32 0, %v237
    %v239 = vrot.slane %v234, %v238
    %v241 = vadd.f32 %v228, %v239
    %v242 = vadd.f32 %v231, %v239
    %v243 = vmul.f32 %v241, 0.5
    %v244 = vmul.f32 %v242, 0.5
    %v245 = vmul.f32 %v241, 0.70710677
    %v246 = vmul.f32 %v242, 0.70710677
    %v247 = verf.f32.pop %v245
    %v248 = verf.f32.pop %v246
    %v249 = vadd.f32 %v247, 1.0
    %v250 = vadd.f32 %v248, 1.0
    %v251 = vmul.f32 %v243, %v249
    %v252 = vmul.f32 %v244, %v250
    %v253 = vpack.c.bf16 %v252, %v251
    %v254 = vld [vmem:[#allocation10] sm:$0xff]
    %v255 = vld [vmem:[#allocation10 + $0x8] sm:$0xff]
    %v256 = vld [vmem:[#allocation10 + $0x10] sm:$0xff]
    %v257 = vld [vmem:[#allocation10 + $0x18] sm:$0xff]
    %v258 = vld [vmem:[#allocation10 + $0x20] sm:$0xff]
    %v259 = vld [vmem:[#allocation10 + $0x28] sm:$0xff]
    %v260 = vld [vmem:[#allocation10 + $0x30] sm:$0xff]
    %v261 = vld [vmem:[#allocation10 + $0x38] sm:$0xff]
    %v262 = vld [vmem:[%s6] sm:$0x3]
    %v264 = vlaneseq
    %v265 = vshrl.u32 %v264, 7
    %v266 = vsub.s32 0, %v265
    %v267 = vrot.slane %v262, %v266
    %v268 = vlaneseq
    %v269 = vshrl.u32 %v268, 7
    %v270 = vsub.s32 1, %v269
    %v271 = vrot.slane %v262, %v270
    %v282 = vunpack.c.l.b16 %v254
    %v283 = vunpack.c.h.b16 %v254
    %v284 = vunpack.c.l.b16 %v255
    %v285 = vunpack.c.h.b16 %v255
    %v286 = vunpack.c.l.b16 %v256
    %v287 = vunpack.c.h.b16 %v256
    %v288 = vunpack.c.l.b16 %v257
    %v289 = vunpack.c.h.b16 %v257
    %v290 = vunpack.c.l.b16 %v258
    %v291 = vunpack.c.h.b16 %v258
    %v292 = vunpack.c.l.b16 %v259
    %v293 = vunpack.c.h.b16 %v259
    %v294 = vunpack.c.l.b16 %v260
    %v295 = vunpack.c.h.b16 %v260
    %v296 = vunpack.c.l.b16 %v261
    %v297 = vunpack.c.h.b16 %v261
    %v298 = vpack.c.b16 %v284, %v282
    %v299 = vpack.c.b16 %v285, %v283
    %v300 = vpack.c.b16 %v288, %v286
    %v301 = vpack.c.b16 %v289, %v287
    %v302 = vpack.c.b16 %v292, %v290
    %v303 = vpack.c.b16 %v293, %v291
    %v304 = vpack.c.b16 %v296, %v294
    %v305 = vpack.c.b16 %v297, %v295
    %vm314 = vcmask 523264
    %v316 = vsel %vm314, %v253, 0
    %318 = vmatprep.subr.bf16.mxu0 %v299
    %319 = vmatpush1.bf16.msra.mxu0 %v298
    %320 = vmatprep.subr.bf16.mxu0 %v301
    %321 = vmatpush1.bf16.msra.mxu0 %v300
    %322 = vmatprep.subr.bf16.mxu0 %v303
    %323 = vmatpush1.bf16.msra.mxu0 %v302
    %324 = vmatprep.subr.bf16.mxu0 %v305
    %325 = vmatpush1.bf16.msra.mxu0 %v304
    %326 = vmatprep.subr.bf16.mxu0 0
    %327 = vmatpush1.bf16.msra.mxu0 0
    %328 = vmatprep.subr.bf16.mxu0 0
    %329 = vmatpush1.bf16.msra.mxu0 0
    %330 = vmatprep.subr.bf16.mxu0 0
    %331 = vmatpush1.bf16.msra.mxu0 0
    %332 = vmatprep.subr.bf16.mxu0 0
    %333 = vmatpush1.bf16.msra.mxu0 0
    %334 = vmatprep.subr.bf16.mxu0 0
    %335 = vmatpush1.bf16.msra.mxu0 0
    %336 = vmatprep.subr.bf16.mxu0 0
    %337 = vmatpush1.bf16.msra.mxu0 0
    %338 = vmatprep.subr.bf16.mxu0 0
    %339 = vmatpush1.bf16.msra.mxu0 0
    %340 = vmatprep.subr.bf16.mxu0 0
    %341 = vmatpush1.bf16.msra.mxu0 0
    %342 = vmatprep.subr.bf16.mxu0 0
    %343 = vmatpush1.bf16.msra.mxu0 0
    %344 = vmatprep.subr.bf16.mxu0 0
    %345 = vmatpush1.bf16.msra.mxu0 0
    %346 = vmatprep.subr.bf16.mxu0 0
    %347 = vmatpush1.bf16.msra.mxu0 0
    %348 = vmatprep.subr.bf16.mxu0 0
    %349 = vmatpush1.bf16.msra.mxu0 0
    %350 = vmatprep.mubr.bf16.mxu0 0
    %351 = vmatmul.mubr.bf16.gmra.mrb[0].mxu0 %v316
    %v352 = vpop.f32.mrb[0].mxu0
    %v353 = vadd.f32 %v267, %v352
    %v354 = vpop.f32.mrb[0].mxu0
    %v355 = vadd.f32 %v271, %v354
    %v356 = vpop.f32.mrb[0].mxu0
    %v357 = vadd.f32 %v267, %v356
    %v358 = vpop.f32.mrb[0].mxu0
    %v359 = vadd.f32 %v271, %v358
    %360 = vdwg.mxu0
    %v361 = vmul.f32 %v353, %v353
    %v362 = vmul.f32 %v357, %v357
    %363 = vadd.xlane.f32.xlu0 %v361
    %v364 = vpop.xlane.xlu0 %363
    %365 = vadd.xlane.f32.xlu0 %v362
    %v366 = vpop.xlane.xlu0 %365
    %v367 = vmax.f32 %v364, 1e-24
    %v368 = vmax.f32 %v366, 1e-24
    %v369 = vrsqrt.pop %v367
    %v370 = vrsqrt.pop %v368
    %v371 = vmul.f32 %v353, %v369
    %v372 = vmul.f32 %v357, %v370
    %373 = vst [vmem:[#allocation11] sm:$0xff] %v371
    %374 = vst [vmem:[#allocation11 + $0x8] sm:$0xff] %v372
    %375 = vst [vmem:[#allocation12] sm:$0xff] %v355
    %376 = vst [vmem:[#allocation12 + $0x8] sm:$0xff] %v359
    // Predicated region
    $region50: #{tpu_custom_call.1} parent=1 // pred_check
      _
    $region51: #{tpu_custom_call.1} parent=1 // pred_check_branch
      %378 = sbr.rel (0) target = $region53
    $region52: #{tpu_custom_call.1} parent=1 // pred_region
      %s380 = ssub.s32 256, 256
      %381 = vsyncadd [#allocation4], %s380
      %s382 = sshll.u32 [#allocation11], 4
      %s383 = int_to_ptr.vmem [resolvable:$true] %s382
      %388 = dma.vmem_to_hbm [thread:$0]  %s383, 256, %s7, [#allocation4], 128, 128, 8
    $region53: #{tpu_custom_call.1} parent=1 // pred_fallthru
      _
    // Predicated region
    $region54: #{tpu_custom_call.1} parent=1 // pred_check
      _
    $region55: #{tpu_custom_call.1} parent=1 // pred_check_branch
      %390 = sbr.rel (0) target = $region57
    $region56: #{tpu_custom_call.1} parent=1 // pred_region
      %s392 = ssub.s32 256, 256
      %393 = vsyncadd [#allocation13], %s392
      %s394 = sshll.u32 [#allocation12], 4
      %s395 = int_to_ptr.vmem [resolvable:$true] %s394
      %400 = dma.vmem_to_hbm [thread:$0]  %s395, 256, %s8, [#allocation13], 128, 128, 8
    $region57: #{tpu_custom_call.1} parent=1 // pred_fallthru
      _
    // Predicated region
    $region58: #{tpu_custom_call.1} parent=1 // pred_check
      _
    $region59: #{tpu_custom_call.1} parent=1 // pred_check_branch
      %402 = sbr.rel (0) target = $region61
    $region60: #{tpu_custom_call.1} parent=1 // pred_region
      %403 = dma.done [#allocation4], 256
    $region61: #{tpu_custom_call.1} parent=1 // pred_fallthru
      _
    // Predicated region
    $region62: #{tpu_custom_call.1} parent=1 // pred_check
      _
    $region63: #{tpu_custom_call.1} parent=1 // pred_check_branch
      %405 = sbr.rel (0) target = $region65
    $region64: #{tpu_custom_call.1} parent=1 // pred_region
      %406 = dma.done [#allocation13], 256
    $region65: #{tpu_custom_call.1} parent=1 // pred_fallthru
      _
    %407 = vsyncpa [#allocation3], 1
    %408 = vsyncpa [#allocation6], 1
    %409 = vsyncpa [#allocation9], 1
    %410 = vsyncpa [#allocation4], 1
    %411 = vsyncpa [#allocation13], 1

</llo_original>
